<compile_context>
chip_gen: v5e
topology: v5e:2x2
jax: 0.10.0
libtpu: 0.0.40
codegen_flags: <defaults>
</compile_context>

<pallas_src>
import functools

import jax
import jax.numpy as jnp
from jax.experimental import pallas as pl
from jax.experimental.pallas import tpu as pltpu


NEG_SLOPE = 0.01  # torch.nn.LeakyReLU default
LANE = 128


def _leaky_relu(x):
    # Valid because 0 < NEG_SLOPE < 1: max(x, a*x) == leaky_relu(x, a).
    return jnp.maximum(x, NEG_SLOPE * x)


def dqn_kernel(idx_ref,                                    # VMEM int32 [TB, 1]
               w1_ref, b1_ref, w2_ref, b2_ref, w3_ref, b3_ref,  # VMEM padded weights
               out_ref):                                   # VMEM f32 [TB, A_pad]
    tb = out_ref.shape[0]
    s_pad = w1_ref.shape[0]

    # Vectorized one_hot(idx, state_dim): iota-compare against the tile's
    # indices (one VPU compare), then a single MXU pass for layer 1.
    idx = idx_ref[...]                                               # (tb, 1)
    iota = jax.lax.broadcasted_iota(jnp.int32, (tb, s_pad), 1)       # (tb, s_pad)
    one_hot = (iota == idx).astype(jnp.float32)

    # Layer 1: Linear + LeakyReLU.
    h1 = jnp.dot(one_hot, w1_ref[...], preferred_element_type=jnp.float32)
    h1 = _leaky_relu(h1 + b1_ref[...])

    # Layer 2: Linear + LeakyReLU.
    h2 = jnp.dot(h1, w2_ref[...], preferred_element_type=jnp.float32)
    h2 = _leaky_relu(h2 + b2_ref[...])

    # Layer 3: Linear -> lane-dense (128-padded) Q-value slab.
    q = jnp.dot(h2, w3_ref[...], preferred_element_type=jnp.float32)
    out_ref[...] = q + b3_ref[...]


def prepare_params(params, *, state_dim, hidden, action_dim):
    """One-time param prep: zero-pad every dim up to a multiple of 128 so the
    kernel always sees lane-dense, (8,128)-tileable weights.  Zero padding is
    numerically exact for this network (padded one-hot cols hit zero W1 rows,
    padded hidden units stay exactly 0 through bias + LeakyReLU)."""
    w1, b1, w2, b2, w3, b3 = params
    s_pad = pl.cdiv(state_dim, LANE) * LANE
    h_pad = pl.cdiv(hidden, LANE) * LANE
    a_pad = pl.cdiv(action_dim, LANE) * LANE
    w1p = jnp.pad(w1, ((0, s_pad - state_dim), (0, h_pad - hidden)))
    b1p = jnp.pad(b1, ((0, 0), (0, h_pad - hidden)))
    w2p = jnp.pad(w2, ((0, h_pad - hidden), (0, h_pad - hidden)))
    b2p = jnp.pad(b2, ((0, 0), (0, h_pad - hidden)))
    w3p = jnp.pad(w3, ((0, h_pad - hidden), (0, a_pad - action_dim)))
    b3p = jnp.pad(b3, ((0, 0), (0, a_pad - action_dim)))
    return (w1p, b1p, w2p, b2p, w3p, b3p)


@functools.partial(jax.jit, static_argnames=("action_dim", "block_b"))
def dqn_forward(idx, padded_params, *, action_dim, block_b=128):
    """idx: int [B] state indices. padded_params: output of prepare_params().
    Returns f32 [B, action_dim] Q-values."""
    w1, b1, w2, b2, w3, b3 = padded_params
    B = idx.shape[0]
    s_pad, h_pad = w1.shape
    a_pad = w3.shape[1]

    # Pad batch up to a multiple of the (sublane-aligned, MXU-filling) tile.
    b_pad = pl.cdiv(B, block_b) * block_b
    idx2d = jnp.pad(idx.astype(jnp.int32), (0, b_pad - B)).reshape(b_pad, 1)
    nb = b_pad // block_b

    grid_spec = pltpu.PrefetchScalarGridSpec(
        num_scalar_prefetch=0,
        grid=(nb,),
        in_specs=[
            pl.BlockSpec((block_b, 1),   lambda i: (i, 0)),   # indices (VMEM)
            pl.BlockSpec((s_pad, h_pad), lambda i: (0, 0)),   # w1 (grid-invariant)
            pl.BlockSpec((1, h_pad),     lambda i: (0, 0)),   # b1
            pl.BlockSpec((h_pad, h_pad), lambda i: (0, 0)),   # w2
            pl.BlockSpec((1, h_pad),     lambda i: (0, 0)),   # b2
            pl.BlockSpec((h_pad, a_pad), lambda i: (0, 0)),   # w3
            pl.BlockSpec((1, a_pad),     lambda i: (0, 0)),   # b3
        ],
        out_specs=pl.BlockSpec((block_b, a_pad), lambda i: (i, 0)),
    )

    flops = 2 * b_pad * (s_pad * h_pad + h_pad * h_pad + h_pad * a_pad)
    bytes_accessed = 4 * (b_pad + s_pad * h_pad + h_pad * h_pad + h_pad * a_pad
                          + 2 * h_pad + a_pad + b_pad * a_pad)

    out = pl.pallas_call(
        dqn_kernel,
        out_shape=jax.ShapeDtypeStruct((b_pad, a_pad), jnp.float32),
        grid_spec=grid_spec,
        compiler_params=pltpu.CompilerParams(
            dimension_semantics=("parallel",)),   # megacore once nb > 1
        cost_estimate=pl.CostEstimate(
            flops=flops, transcendentals=0, bytes_accessed=bytes_accessed),
    )(idx2d, w1, b1, w2, b2, w3, b3)

    return out[:B, :action_dim]


def init_params(key, state_dim, hidden, action_dim):
    """Deterministic init mimicking torch.nn.Linear default (uniform +-1/sqrt(fan_in))."""
    def linear(key, fan_in, fan_out):
        kw, kb = jax.random.split(key)
        bound = 1.0 / jnp.sqrt(fan_in)
        w = jax.random.uniform(kw, (fan_in, fan_out), jnp.float32, -bound, bound)
        b = jax.random.uniform(kb, (1, fan_out), jnp.float32, -bound, bound)
        return w, b

    k1, k2, k3 = jax.random.split(key, 3)
    w1, b1 = linear(k1, state_dim, hidden)
    w2, b2 = linear(k2, hidden, hidden)
    w3, b3 = linear(k3, hidden, action_dim)
    return (w1, b1, w2, b2, w3, b3)


def dqn_forward_ref(idx, params, action_dim):
    """Pure-JAX reference (unpadded params) for correctness checking."""
    w1, b1, w2, b2, w3, b3 = params
    state_dim = w1.shape[0]
    x = jax.nn.one_hot(idx, state_dim, dtype=jnp.float32)
    h1 = jax.nn.leaky_relu(x @ w1 + b1, NEG_SLOPE)
    h2 = jax.nn.leaky_relu(h1 @ w2 + b2, NEG_SLOPE)
    return h2 @ w3 + b3


if __name__ == "__main__":
    state_dim = 16
    hidden = 32
    action_dim = 4
    batch = 10  # deliberately not a multiple of the batch tile -> exercises padding

    key = jax.random.PRNGKey(0)
    k_params, k_idx = jax.random.split(key)

    params = init_params(k_params, state_dim, hidden, action_dim)
    padded_params = prepare_params(params, state_dim=state_dim, hidden=hidden,
                                   action_dim=action_dim)   # one-time prep, off the fwd path
    idx = jax.random.randint(k_idx, (batch,), 0, state_dim, dtype=jnp.int32)

    q = dqn_forward(idx, padded_params, action_dim=action_dim)
    jax.block_until_ready(q)

    q_ref = dqn_forward_ref(idx, params, action_dim)
    assert q.shape == (batch, action_dim)
    assert jnp.allclose(q, q_ref, atol=1e-5, rtol=1e-5), "mismatch vs JAX reference"

    print("KERNEL_OK")
</pallas_src>

<mosaic_0001>
module attributes {stable_mosaic.version = 11 : i64} {
  func.func @dqn_kernel(%arg0: i32, %arg1: memref<128x1xi32, #tpu.memory_space<vmem>>, %arg2: memref<128x128xf32, #tpu.memory_space<vmem>>, %arg3: memref<1x128xf32, #tpu.memory_space<vmem>>, %arg4: memref<128x128xf32, #tpu.memory_space<vmem>>, %arg5: memref<1x128xf32, #tpu.memory_space<vmem>>, %arg6: memref<128x128xf32, #tpu.memory_space<vmem>>, %arg7: memref<1x128xf32, #tpu.memory_space<vmem>>, %arg8: memref<128x128xf32, #tpu.memory_space<vmem>>) attributes {dimension_semantics = [#tpu.dimension_semantics<parallel>], iteration_bounds = array<i64: 1>, scalar_prefetch = 0 : i64, scratch_operands = 0 : i64, tpu.core_type = #tpu.core_type<tc>, window_params = [{transform_indices = @transform_0, window_bounds = array<i64: 128, 1>}, {pipeline_mode = #tpu.pipeline_mode<synchronous>, transform_indices = @transform_1, window_bounds = array<i64: 128, 128>}, {pipeline_mode = #tpu.pipeline_mode<synchronous>, transform_indices = @transform_2, window_bounds = array<i64: 1, 128>}, {pipeline_mode = #tpu.pipeline_mode<synchronous>, transform_indices = @transform_3, window_bounds = array<i64: 128, 128>}, {pipeline_mode = #tpu.pipeline_mode<synchronous>, transform_indices = @transform_4, window_bounds = array<i64: 1, 128>}, {pipeline_mode = #tpu.pipeline_mode<synchronous>, transform_indices = @transform_5, window_bounds = array<i64: 128, 128>}, {pipeline_mode = #tpu.pipeline_mode<synchronous>, transform_indices = @transform_6, window_bounds = array<i64: 1, 128>}, {transform_indices = @transform_7, window_bounds = array<i64: 128, 128>}]} {
    %c0 = arith.constant 0 : index
    %c0_0 = arith.constant 0 : index
    %0 = vector.load %arg1[%c0, %c0_0] : memref<128x1xi32, #tpu.memory_space<vmem>>, vector<128x1xi32>
    %1 = tpu.iota {dimensions = array<i32: 1>} : vector<128x128xi32>
    %2 = vector.broadcast %0 : vector<128x1xi32> to vector<128x128xi32>
    %3 = arith.cmpi eq, %1, %2 : vector<128x128xi32>
    %4 = arith.extui %3 : vector<128x128xi1> to vector<128x128xi32>
    %5 = arith.sitofp %4 : vector<128x128xi32> to vector<128x128xf32>
    %c0_1 = arith.constant 0 : index
    %c0_2 = arith.constant 0 : index
    %6 = vector.load %arg2[%c0_1, %c0_2] : memref<128x128xf32, #tpu.memory_space<vmem>>, vector<128x128xf32>
    %cst = arith.constant dense<0.000000e+00> : vector<128x128xf32>
    %7 = tpu.matmul %5, %6, %cst {dimension_numbers = #tpu.dot_dimension_numbers<[1], [0], [0], [1], [0, 0, 1, 1], [], []>} : vector<128x128xf32>, vector<128x128xf32>, vector<128x128xf32> -> vector<128x128xf32>
    %c0_3 = arith.constant 0 : index
    %c0_4 = arith.constant 0 : index
    %8 = vector.load %arg3[%c0_3, %c0_4] : memref<1x128xf32, #tpu.memory_space<vmem>>, vector<1x128xf32>
    %9 = vector.broadcast %8 : vector<1x128xf32> to vector<128x128xf32>
    %10 = arith.addf %7, %9 : vector<128x128xf32>
    %cst_5 = arith.constant 0.00999999977 : f32
    %11 = vector.broadcast %cst_5 : f32 to vector<128x128xf32>
    %12 = arith.mulf %11, %10 : vector<128x128xf32>
    %13 = arith.maximumf %10, %12 : vector<128x128xf32>
    %c0_6 = arith.constant 0 : index
    %c0_7 = arith.constant 0 : index
    %14 = vector.load %arg4[%c0_6, %c0_7] : memref<128x128xf32, #tpu.memory_space<vmem>>, vector<128x128xf32>
    %cst_8 = arith.constant dense<0.000000e+00> : vector<128x128xf32>
    %15 = tpu.matmul %13, %14, %cst_8 {dimension_numbers = #tpu.dot_dimension_numbers<[1], [0], [0], [1], [0, 0, 1, 1], [], []>} : vector<128x128xf32>, vector<128x128xf32>, vector<128x128xf32> -> vector<128x128xf32>
    %c0_9 = arith.constant 0 : index
    %c0_10 = arith.constant 0 : index
    %16 = vector.load %arg5[%c0_9, %c0_10] : memref<1x128xf32, #tpu.memory_space<vmem>>, vector<1x128xf32>
    %17 = vector.broadcast %16 : vector<1x128xf32> to vector<128x128xf32>
    %18 = arith.addf %15, %17 : vector<128x128xf32>
    %cst_11 = arith.constant 0.00999999977 : f32
    %19 = vector.broadcast %cst_11 : f32 to vector<128x128xf32>
    %20 = arith.mulf %19, %18 : vector<128x128xf32>
    %21 = arith.maximumf %18, %20 : vector<128x128xf32>
    %c0_12 = arith.constant 0 : index
    %c0_13 = arith.constant 0 : index
    %22 = vector.load %arg6[%c0_12, %c0_13] : memref<128x128xf32, #tpu.memory_space<vmem>>, vector<128x128xf32>
    %cst_14 = arith.constant dense<0.000000e+00> : vector<128x128xf32>
    %23 = tpu.matmul %21, %22, %cst_14 {dimension_numbers = #tpu.dot_dimension_numbers<[1], [0], [0], [1], [0, 0, 1, 1], [], []>} : vector<128x128xf32>, vector<128x128xf32>, vector<128x128xf32> -> vector<128x128xf32>
    %c0_15 = arith.constant 0 : index
    %c0_16 = arith.constant 0 : index
    %24 = vector.load %arg7[%c0_15, %c0_16] : memref<1x128xf32, #tpu.memory_space<vmem>>, vector<1x128xf32>
    %25 = vector.broadcast %24 : vector<1x128xf32> to vector<128x128xf32>
    %26 = arith.addf %23, %25 : vector<128x128xf32>
    %c0_17 = arith.constant 0 : index
    %c0_18 = arith.constant 0 : index
    %27 = vector.load %arg8[%c0_17, %c0_18] : memref<128x128xf32, #tpu.memory_space<vmem>>, vector<128x128xf32>
    tpu.vector_store %arg8[%c0_17, %c0_18], %26 {strides = array<i32>} : memref<128x128xf32, #tpu.memory_space<vmem>>, vector<128x128xf32>,
    return
  }
  func.func @transform_0(%arg0: i32) -> (i32, i32) {
    %c0_i32 = arith.constant 0 : i32
    %c0_i32_0 = arith.constant 0 : i32
    return %arg0, %c0_i32 : i32, i32
  }
  func.func @transform_1(%arg0: i32) -> (i32, i32) {
    %c0_i32 = arith.constant 0 : i32
    %c0_i32_0 = arith.constant 0 : i32
    %c0_i32_1 = arith.constant 0 : i32
    return %c0_i32, %c0_i32_0 : i32, i32
  }
  func.func @transform_2(%arg0: i32) -> (i32, i32) {
    %c0_i32 = arith.constant 0 : i32
    %c0_i32_0 = arith.constant 0 : i32
    %c0_i32_1 = arith.constant 0 : i32
    return %c0_i32, %c0_i32_0 : i32, i32
  }
  func.func @transform_3(%arg0: i32) -> (i32, i32) {
    %c0_i32 = arith.constant 0 : i32
    %c0_i32_0 = arith.constant 0 : i32
    %c0_i32_1 = arith.constant 0 : i32
    return %c0_i32, %c0_i32_0 : i32, i32
  }
  func.func @transform_4(%arg0: i32) -> (i32, i32) {
    %c0_i32 = arith.constant 0 : i32
    %c0_i32_0 = arith.constant 0 : i32
    %c0_i32_1 = arith.constant 0 : i32
    return %c0_i32, %c0_i32_0 : i32, i32
  }
  func.func @transform_5(%arg0: i32) -> (i32, i32) {
    %c0_i32 = arith.constant 0 : i32
    %c0_i32_0 = arith.constant 0 : i32
    %c0_i32_1 = arith.constant 0 : i32
    return %c0_i32, %c0_i32_0 : i32, i32
  }
  func.func @transform_6(%arg0: i32) -> (i32, i32) {
    %c0_i32 = arith.constant 0 : i32
    %c0_i32_0 = arith.constant 0 : i32
    %c0_i32_1 = arith.constant 0 : i32
    return %c0_i32, %c0_i32_0 : i32, i32
  }
  func.func @transform_7(%arg0: i32) -> (i32, i32) {
    %c0_i32 = arith.constant 0 : i32
    %c0_i32_0 = arith.constant 0 : i32
    return %arg0, %c0_i32 : i32, i32
  }
}

</mosaic_0001>

<llo_original>
// kernel: dqn_forward.1
$region0: #{dqn_forward.1}
  #allocation0 [shape = 'u32[]', space=smem, size = 0x4, offset = 0x4, fixed_abs, tag = 'smem constant byte address 0x4 - core index']
  #allocation1 [shape = 'u32[72,128]{1,0:T(1,128)}', space=vmem, size = 0x9000, scoped, tag = 'internal scratch']
  %s0 = inlined_call_operand.vmem [shape: s32[128,1], index: 0, kind: input, shape index: {}]
  %s1 = inlined_call_operand.vmem [shape: f32[128,128], index: 1, kind: input, shape index: {}]
  %s2 = inlined_call_operand.vmem [shape: f32[1,128], index: 2, kind: input, shape index: {}]
  %s3 = inlined_call_operand.hbm [shape: f32[128,128], index: 3, kind: input, shape index: {}]
  %s4 = inlined_call_operand.vmem [shape: f32[1,128], index: 4, kind: input, shape index: {}]
  %s5 = inlined_call_operand.hbm [shape: f32[128,128], index: 5, kind: input, shape index: {}]
  %s6 = inlined_call_operand.vmem [shape: f32[1,128], index: 6, kind: input, shape index: {}]
  %s7 = inlined_call_operand.vmem [shape: f32[128,128], index: 7, kind: output, shape index: {}]
  %s8 = sld [smem:[#allocation0]]
  $region46: #{dqn_forward.1} parent=0
    _
  %s10 = ssub.s32 1, %s8
  %s11 = scalar_select 0, %s10, %s8
  $region1: #{dqn_forward.1} parent=0
    #allocation2 [shape = 'u8[65536]{0}', space=vmem, size = 0x10000, scoped, tag = 'input window, operand 3, single buffered']
    #allocation3 [shape = 's32[1]{0}', space=sflag, size = 0x4, scoped, tag = 'scoped memory for dqn_forward.1']
    #allocation4 [shape = 'u8[65536]{0}', space=vmem, size = 0x10000, scoped, tag = 'input window, operand 5, single buffered']
    #allocation5 [shape = 's32[1]{0}', space=sflag, size = 0x4, scoped, tag = 'scoped memory for dqn_forward.1']
    %12 = vsyncpa [#allocation3], 0
    %13 = vsyncpa [#allocation5], 0
    // Predicated region
    $region2: #{dqn_forward.1} parent=1 // pred_check
      _
    $region3: #{dqn_forward.1} parent=1 // pred_check_branch
      %15 = sbr.rel (0) target = $region5
    $region4: #{dqn_forward.1} parent=1 // pred_region
      _
    $region5: #{dqn_forward.1} parent=1 // pred_fallthru
      _
    // Predicated region
    $region6: #{dqn_forward.1} parent=1 // pred_check
      _
    $region7: #{dqn_forward.1} parent=1 // pred_check_branch
      %17 = sbr.rel (0) target = $region9
    $region8: #{dqn_forward.1} parent=1 // pred_region
      _
    $region9: #{dqn_forward.1} parent=1 // pred_fallthru
      _
    // Predicated region
    $region10: #{dqn_forward.1} parent=1 // pred_check
      _
    $region11: #{dqn_forward.1} parent=1 // pred_check_branch
      %19 = sbr.rel (0) target = $region13
    $region12: #{dqn_forward.1} parent=1 // pred_region
      _
    $region13: #{dqn_forward.1} parent=1 // pred_fallthru
      _
    // Predicated region
    $region14: #{dqn_forward.1} parent=1 // pred_check
      _
    $region15: #{dqn_forward.1} parent=1 // pred_check_branch
      %21 = sbr.rel (0) target = $region17
    $region16: #{dqn_forward.1} parent=1 // pred_region
      %23 = vsyncadd [#allocation3], 0
      %s24 = sshll.u32 %s3, 4
      %s25 = int_to_ptr.hbm [resolvable:$true] %s24
      %s26 = sshll.u32 [#allocation2], 4
      %s27 = int_to_ptr.vmem [resolvable:$true] %s26
      %32 = dma.hbm_to_vmem [thread:$0]  %s25, 2048, %s27, [#allocation3], 128, 128, 8
    $region17: #{dqn_forward.1} parent=1 // pred_fallthru
      _
    // Predicated region
    $region18: #{dqn_forward.1} parent=1 // pred_check
      _
    $region19: #{dqn_forward.1} parent=1 // pred_check_branch
      %34 = sbr.rel (0) target = $region21
    $region20: #{dqn_forward.1} parent=1 // pred_region
      _
    $region21: #{dqn_forward.1} parent=1 // pred_fallthru
      _
    // Predicated region
    $region22: #{dqn_forward.1} parent=1 // pred_check
      _
    $region23: #{dqn_forward.1} parent=1 // pred_check_branch
      %36 = sbr.rel (0) target = $region25
    $region24: #{dqn_forward.1} parent=1 // pred_region
      %38 = vsyncadd [#allocation5], 0
      %s39 = sshll.u32 %s5, 4
      %s40 = int_to_ptr.hbm [resolvable:$true] %s39
      %s41 = sshll.u32 [#allocation4], 4
      %s42 = int_to_ptr.vmem [resolvable:$true] %s41
      %47 = dma.hbm_to_vmem [thread:$0]  %s40, 2048, %s42, [#allocation5], 128, 128, 8
    $region25: #{dqn_forward.1} parent=1 // pred_fallthru
      _
    // Predicated region
    $region26: #{dqn_forward.1} parent=1 // pred_check
      _
    $region27: #{dqn_forward.1} parent=1 // pred_check_branch
      %49 = sbr.rel (0) target = $region29
    $region28: #{dqn_forward.1} parent=1 // pred_region
      _
    $region29: #{dqn_forward.1} parent=1 // pred_fallthru
      _
    // Predicated region
    $region30: #{dqn_forward.1} parent=1 // pred_check
      _
    $region31: #{dqn_forward.1} parent=1 // pred_check_branch
      %51 = sbr.rel (0) target = $region33
    $region32: #{dqn_forward.1} parent=1 // pred_region
      %53 = dma.done [#allocation3], 2048
    $region33: #{dqn_forward.1} parent=1 // pred_fallthru
      _
    // Predicated region
    $region34: #{dqn_forward.1} parent=1 // pred_check
      _
    $region35: #{dqn_forward.1} parent=1 // pred_check_branch
      %55 = sbr.rel (0) target = $region37
    $region36: #{dqn_forward.1} parent=1 // pred_region
      %57 = dma.done [#allocation5], 2048
    $region37: #{dqn_forward.1} parent=1 // pred_fallthru
      _
    %v58 = vld [vmem:[%s0] sm:$0xff]
    %v59 = vld [vmem:[%s0 + $0x8] sm:$0xff]
    %v60 = vld [vmem:[%s0 + $0x10] sm:$0xff]
    %v61 = vld [vmem:[%s0 + $0x18] sm:$0xff]
    %v62 = vld [vmem:[%s0 + $0x20] sm:$0xff]
    %v63 = vld [vmem:[%s0 + $0x28] sm:$0xff]
    %v64 = vld [vmem:[%s0 + $0x30] sm:$0xff]
    %v65 = vld [vmem:[%s0 + $0x38] sm:$0xff]
    %v66 = vld [vmem:[%s0 + $0x40] sm:$0xff]
    %v67 = vld [vmem:[%s0 + $0x48] sm:$0xff]
    %v68 = vld [vmem:[%s0 + $0x50] sm:$0xff]
    %v69 = vld [vmem:[%s0 + $0x58] sm:$0xff]
    %v70 = vld [vmem:[%s0 + $0x60] sm:$0xff]
    %v71 = vld [vmem:[%s0 + $0x68] sm:$0xff]
    %v72 = vld [vmem:[%s0 + $0x70] sm:$0xff]
    %v73 = vld [vmem:[%s0 + $0x78] sm:$0xff]
    %v74 = vlaneseq
    %v75 = vand.u32 %v74, 127
    %76 = vset.pattern.permute.xlu0 0
    %77 = vperm.xlu0 %76, %v58
    %v78 = vpop.permute.xlu0 %77
    %79 = vset.pattern.permute.xlu0 0
    %80 = vperm.xlu0 %79, %v59
    %v81 = vpop.permute.xlu0 %80
    %82 = vset.pattern.permute.xlu0 0
    %83 = vperm.xlu0 %82, %v60
    %v84 = vpop.permute.xlu0 %83
    %85 = vset.pattern.permute.xlu0 0
    %86 = vperm.xlu0 %85, %v61
    %v87 = vpop.permute.xlu0 %86
    %88 = vset.pattern.permute.xlu0 0
    %89 = vperm.xlu0 %88, %v62
    %v90 = vpop.permute.xlu0 %89
    %91 = vset.pattern.permute.xlu0 0
    %92 = vperm.xlu0 %91, %v63
    %v93 = vpop.permute.xlu0 %92
    %94 = vset.pattern.permute.xlu0 0
    %95 = vperm.xlu0 %94, %v64
    %v96 = vpop.permute.xlu0 %95
    %97 = vset.pattern.permute.xlu0 0
    %98 = vperm.xlu0 %97, %v65
    %v99 = vpop.permute.xlu0 %98
    %100 = vset.pattern.permute.xlu0 0
    %101 = vperm.xlu0 %100, %v66
    %v102 = vpop.permute.xlu0 %101
    %103 = vset.pattern.permute.xlu0 0
    %104 = vperm.xlu0 %103, %v67
    %v105 = vpop.permute.xlu0 %104
    %106 = vset.pattern.permute.xlu0 0
    %107 = vperm.xlu0 %106, %v68
    %v108 = vpop.permute.xlu0 %107
    %109 = vset.pattern.permute.xlu0 0
    %110 = vperm.xlu0 %109, %v69
    %v111 = vpop.permute.xlu0 %110
    %112 = vset.pattern.permute.xlu0 0
    %113 = vperm.xlu0 %112, %v70
    %v114 = vpop.permute.xlu0 %113
    %115 = vset.pattern.permute.xlu0 0
    %116 = vperm.xlu0 %115, %v71
    %v117 = vpop.permute.xlu0 %116
    %118 = vset.pattern.permute.xlu0 0
    %119 = vperm.xlu0 %118, %v72
    %v120 = vpop.permute.xlu0 %119
    %121 = vset.pattern.permute.xlu0 0
    %122 = vperm.xlu0 %121, %v73
    %v123 = vpop.permute.xlu0 %122
    %vm124 = vcmp.eq.s32.totalorder %v75, %v78
    %vm125 = vcmp.eq.s32.totalorder %v75, %v81
    %vm126 = vcmp.eq.s32.totalorder %v75, %v84
    %vm127 = vcmp.eq.s32.totalorder %v75, %v87
    %vm128 = vcmp.eq.s32.totalorder %v75, %v90
    %vm129 = vcmp.eq.s32.totalorder %v75, %v93
    %vm130 = vcmp.eq.s32.totalorder %v75, %v96
    %vm131 = vcmp.eq.s32.totalorder %v75, %v99
    %vm132 = vcmp.eq.s32.totalorder %v75, %v102
    %vm133 = vcmp.eq.s32.totalorder %v75, %v105
    %vm134 = vcmp.eq.s32.totalorder %v75, %v108
    %vm135 = vcmp.eq.s32.totalorder %v75, %v111
    %vm136 = vcmp.eq.s32.totalorder %v75, %v114
    %vm137 = vcmp.eq.s32.totalorder %v75, %v117
    %vm138 = vcmp.eq.s32.totalorder %v75, %v120
    %vm139 = vcmp.eq.s32.totalorder %v75, %v123
    %v140 = vsel %vm124, 1, 0
    %v141 = vsel %vm125, 1, 0
    %v142 = vsel %vm126, 1, 0
    %v143 = vsel %vm127, 1, 0
    %v144 = vsel %vm128, 1, 0
    %v145 = vsel %vm129, 1, 0
    %v146 = vsel %vm130, 1, 0
    %v147 = vsel %vm131, 1, 0
    %v148 = vsel %vm132, 1, 0
    %v149 = vsel %vm133, 1, 0
    %v150 = vsel %vm134, 1, 0
    %v151 = vsel %vm135, 1, 0
    %v152 = vsel %vm136, 1, 0
    %v153 = vsel %vm137, 1, 0
    %v154 = vsel %vm138, 1, 0
    %v155 = vsel %vm139, 1, 0
    %v156 = vcvt.s32.f32 %v140
    %v157 = vcvt.s32.f32 %v141
    %v158 = vcvt.s32.f32 %v142
    %v159 = vcvt.s32.f32 %v143
    %v160 = vcvt.s32.f32 %v144
    %v161 = vcvt.s32.f32 %v145
    %v162 = vcvt.s32.f32 %v146
    %v163 = vcvt.s32.f32 %v147
    %v164 = vcvt.s32.f32 %v148
    %v165 = vcvt.s32.f32 %v149
    %v166 = vcvt.s32.f32 %v150
    %v167 = vcvt.s32.f32 %v151
    %v168 = vcvt.s32.f32 %v152
    %v169 = vcvt.s32.f32 %v153
    %v170 = vcvt.s32.f32 %v154
    %v171 = vcvt.s32.f32 %v155
    %v172 = vld [vmem:[%s1] sm:$0xff]
    %v173 = vld [vmem:[%s1 + $0x8] sm:$0xff]
    %v174 = vld [vmem:[%s1 + $0x10] sm:$0xff]
    %v175 = vld [vmem:[%s1 + $0x18] sm:$0xff]
    %v176 = vld [vmem:[%s1 + $0x20] sm:$0xff]
    %v177 = vld [vmem:[%s1 + $0x28] sm:$0xff]
    %v178 = vld [vmem:[%s1 + $0x30] sm:$0xff]
    %v179 = vld [vmem:[%s1 + $0x38] sm:$0xff]
    %v180 = vld [vmem:[%s1 + $0x40] sm:$0xff]
    %v181 = vld [vmem:[%s1 + $0x48] sm:$0xff]
    %v182 = vld [vmem:[%s1 + $0x50] sm:$0xff]
    %v183 = vld [vmem:[%s1 + $0x58] sm:$0xff]
    %v184 = vld [vmem:[%s1 + $0x60] sm:$0xff]
    %v185 = vld [vmem:[%s1 + $0x68] sm:$0xff]
    %v186 = vld [vmem:[%s1 + $0x70] sm:$0xff]
    %v187 = vld [vmem:[%s1 + $0x78] sm:$0xff]
    %v188 = vld [vmem:[%s2] sm:$0x1]
    %v190 = vperm.slane %v188, 0
    %192 = vmatpush.msra.mxu0 %v187
    %193 = vmatpush.msra.mxu0 %v186
    %194 = vmatpush.msra.mxu0 %v185
    %195 = vmatpush.msra.mxu0 %v184
    %196 = vmatpush.msra.mxu0 %v183
    %197 = vmatpush.msra.mxu0 %v182
    %198 = vmatpush.msra.mxu0 %v181
    %199 = vmatpush.msra.mxu0 %v180
    %200 = vmatpush.msra.mxu0 %v179
    %201 = vmatpush.msra.mxu0 %v178
    %202 = vmatpush.msra.mxu0 %v177
    %203 = vmatpush.msra.mxu0 %v176
    %204 = vmatpush.msra.mxu0 %v175
    %205 = vmatpush.msra.mxu0 %v174
    %206 = vmatpush.msra.mxu0 %v173
    %207 = vmatpush.msra.mxu0 %v172
    %208 = vmatmul.f32.gmra.mxu0 %v156
    %v209 = vpop.f32.mrf.mxu0
    %v210 = vadd.f32 %v190, %v209
    %211 = vmatmul.f32.gmra.mxu0 %v157
    %v212 = vpop.f32.mrf.mxu0
    %v213 = vadd.f32 %v190, %v212
    %214 = vmatmul.f32.gmra.mxu0 %v158
    %v215 = vpop.f32.mrf.mxu0
    %v216 = vadd.f32 %v190, %v215
    %217 = vmatmul.f32.gmra.mxu0 %v159
    %v218 = vpop.f32.mrf.mxu0
    %v219 = vadd.f32 %v190, %v218
    %220 = vmatmul.f32.gmra.mxu0 %v160
    %v221 = vpop.f32.mrf.mxu0
    %v222 = vadd.f32 %v190, %v221
    %223 = vmatmul.f32.gmra.mxu0 %v161
    %v224 = vpop.f32.mrf.mxu0
    %v225 = vadd.f32 %v190, %v224
    %226 = vmatmul.f32.gmra.mxu0 %v162
    %v227 = vpop.f32.mrf.mxu0
    %v228 = vadd.f32 %v190, %v227
    %229 = vmatmul.f32.gmra.mxu0 %v163
    %v230 = vpop.f32.mrf.mxu0
    %v231 = vadd.f32 %v190, %v230
    %232 = vmatmul.f32.gmra.mxu0 %v164
    %v233 = vpop.f32.mrf.mxu0
    %v234 = vadd.f32 %v190, %v233
    %235 = vmatmul.f32.gmra.mxu0 %v165
    %v236 = vpop.f32.mrf.mxu0
    %v237 = vadd.f32 %v190, %v236
    %238 = vmatmul.f32.gmra.mxu0 %v166
    %v239 = vpop.f32.mrf.mxu0
    %v240 = vadd.f32 %v190, %v239
    %241 = vmatmul.f32.gmra.mxu0 %v167
    %v242 = vpop.f32.mrf.mxu0
    %v243 = vadd.f32 %v190, %v242
    %244 = vmatmul.f32.gmra.mxu0 %v168
    %v245 = vpop.f32.mrf.mxu0
    %v246 = vadd.f32 %v190, %v245
    %247 = vmatmul.f32.gmra.mxu0 %v169
    %v248 = vpop.f32.mrf.mxu0
    %v249 = vadd.f32 %v190, %v248
    %250 = vmatmul.f32.gmra.mxu0 %v170
    %v251 = vpop.f32.mrf.mxu0
    %v252 = vadd.f32 %v190, %v251
    %253 = vmatmul.f32.gmra.mxu0 %v171
    %v254 = vpop.f32.mrf.mxu0
    %v255 = vadd.f32 %v190, %v254
    %256 = vdwg.mxu0
    %v257 = vmul.f32 %v210, 0.01
    %v258 = vmul.f32 %v213, 0.01
    %v259 = vmul.f32 %v216, 0.01
    %v260 = vmul.f32 %v219, 0.01
    %v261 = vmul.f32 %v222, 0.01
    %v262 = vmul.f32 %v225, 0.01
    %v263 = vmul.f32 %v228, 0.01
    %v264 = vmul.f32 %v231, 0.01
    %v265 = vmul.f32 %v234, 0.01
    %v266 = vmul.f32 %v237, 0.01
    %v267 = vmul.f32 %v240, 0.01
    %v268 = vmul.f32 %v243, 0.01
    %v269 = vmul.f32 %v246, 0.01
    %v270 = vmul.f32 %v249, 0.01
    %v271 = vmul.f32 %v252, 0.01
    %v272 = vmul.f32 %v255, 0.01
    %v273 = vmax.f32 %v210, %v257
    %v274 = vmax.f32 %v213, %v258
    %v275 = vmax.f32 %v216, %v259
    %v276 = vmax.f32 %v219, %v260
    %v277 = vmax.f32 %v222, %v261
    %v278 = vmax.f32 %v225, %v262
    %v279 = vmax.f32 %v228, %v263
    %v280 = vmax.f32 %v231, %v264
    %v281 = vmax.f32 %v234, %v265
    %v282 = vmax.f32 %v237, %v266
    %v283 = vmax.f32 %v240, %v267
    %v284 = vmax.f32 %v243, %v268
    %v285 = vmax.f32 %v246, %v269
    %v286 = vmax.f32 %v249, %v270
    %v287 = vmax.f32 %v252, %v271
    %v288 = vmax.f32 %v255, %v272
    %v289 = vld [vmem:[#allocation2] sm:$0xff]
    %v290 = vld [vmem:[#allocation2 + $0x8] sm:$0xff]
    %v291 = vld [vmem:[#allocation2 + $0x10] sm:$0xff]
    %v292 = vld [vmem:[#allocation2 + $0x18] sm:$0xff]
    %v293 = vld [vmem:[#allocation2 + $0x20] sm:$0xff]
    %v294 = vld [vmem:[#allocation2 + $0x28] sm:$0xff]
    %v295 = vld [vmem:[#allocation2 + $0x30] sm:$0xff]
    %v296 = vld [vmem:[#allocation2 + $0x38] sm:$0xff]
    %v297 = vld [vmem:[#allocation2 + $0x40] sm:$0xff]
    %v298 = vld [vmem:[#allocation2 + $0x48] sm:$0xff]
    %v299 = vld [vmem:[#allocation2 + $0x50] sm:$0xff]
    %v300 = vld [vmem:[#allocation2 + $0x58] sm:$0xff]
    %v301 = vld [vmem:[#allocation2 + $0x60] sm:$0xff]
    %v302 = vld [vmem:[#allocation2 + $0x68] sm:$0xff]
    %v303 = vld [vmem:[#allocation2 + $0x70] sm:$0xff]
    %v304 = vld [vmem:[#allocation2 + $0x78] sm:$0xff]
    %v305 = vld [vmem:[%s4] sm:$0x1]
    %v307 = vperm.slane %v305, 0
    %309 = vmatpush.msra.mxu0 %v304
    %310 = vmatpush.msra.mxu0 %v303
    %311 = vmatpush.msra.mxu0 %v302
    %312 = vmatpush.msra.mxu0 %v301
    %313 = vmatpush.msra.mxu0 %v300
    %314 = vmatpush.msra.mxu0 %v299
    %315 = vmatpush.msra.mxu0 %v298
    %316 = vmatpush.msra.mxu0 %v297
    %317 = vmatpush.msra.mxu0 %v296
    %318 = vmatpush.msra.mxu0 %v295
    %319 = vmatpush.msra.mxu0 %v294
    %320 = vmatpush.msra.mxu0 %v293
    %321 = vmatpush.msra.mxu0 %v292
    %322 = vmatpush.msra.mxu0 %v291
    %323 = vmatpush.msra.mxu0 %v290
    %324 = vmatpush.msra.mxu0 %v289
    %325 = vmatmul.f32.gmra.mxu0 %v273
    %v326 = vpop.f32.mrf.mxu0
    %v327 = vadd.f32 %v307, %v326
    %328 = vmatmul.f32.gmra.mxu0 %v274
    %v329 = vpop.f32.mrf.mxu0
    %v330 = vadd.f32 %v307, %v329
    %331 = vmatmul.f32.gmra.mxu0 %v275
    %v332 = vpop.f32.mrf.mxu0
    %v333 = vadd.f32 %v307, %v332
    %334 = vmatmul.f32.gmra.mxu0 %v276
    %v335 = vpop.f32.mrf.mxu0
    %v336 = vadd.f32 %v307, %v335
    %337 = vmatmul.f32.gmra.mxu0 %v277
    %v338 = vpop.f32.mrf.mxu0
    %v339 = vadd.f32 %v307, %v338
    %340 = vmatmul.f32.gmra.mxu0 %v278
    %v341 = vpop.f32.mrf.mxu0
    %v342 = vadd.f32 %v307, %v341
    %343 = vmatmul.f32.gmra.mxu0 %v279
    %v344 = vpop.f32.mrf.mxu0
    %v345 = vadd.f32 %v307, %v344
    %346 = vmatmul.f32.gmra.mxu0 %v280
    %v347 = vpop.f32.mrf.mxu0
    %v348 = vadd.f32 %v307, %v347
    %349 = vmatmul.f32.gmra.mxu0 %v281
    %v350 = vpop.f32.mrf.mxu0
    %v351 = vadd.f32 %v307, %v350
    %352 = vmatmul.f32.gmra.mxu0 %v282
    %v353 = vpop.f32.mrf.mxu0
    %v354 = vadd.f32 %v307, %v353
    %355 = vmatmul.f32.gmra.mxu0 %v283
    %v356 = vpop.f32.mrf.mxu0
    %v357 = vadd.f32 %v307, %v356
    %358 = vmatmul.f32.gmra.mxu0 %v284
    %v359 = vpop.f32.mrf.mxu0
    %v360 = vadd.f32 %v307, %v359
    %361 = vmatmul.f32.gmra.mxu0 %v285
    %v362 = vpop.f32.mrf.mxu0
    %v363 = vadd.f32 %v307, %v362
    %364 = vmatmul.f32.gmra.mxu0 %v286
    %v365 = vpop.f32.mrf.mxu0
    %v366 = vadd.f32 %v307, %v365
    %367 = vmatmul.f32.gmra.mxu0 %v287
    %v368 = vpop.f32.mrf.mxu0
    %v369 = vadd.f32 %v307, %v368
    %370 = vmatmul.f32.gmra.mxu0 %v288
    %v371 = vpop.f32.mrf.mxu0
    %v372 = vadd.f32 %v307, %v371
    %373 = vdwg.mxu0
    %v374 = vmul.f32 %v327, 0.01
    %v375 = vmul.f32 %v330, 0.01
    %v376 = vmul.f32 %v333, 0.01
    %v377 = vmul.f32 %v336, 0.01
    %v378 = vmul.f32 %v339, 0.01
    %v379 = vmul.f32 %v342, 0.01
    %v380 = vmul.f32 %v345, 0.01
    %v381 = vmul.f32 %v348, 0.01
    %v382 = vmul.f32 %v351, 0.01
    %v383 = vmul.f32 %v354, 0.01
    %v384 = vmul.f32 %v357, 0.01
    %v385 = vmul.f32 %v360, 0.01
    %v386 = vmul.f32 %v363, 0.01
    %v387 = vmul.f32 %v366, 0.01
    %v388 = vmul.f32 %v369, 0.01
    %v389 = vmul.f32 %v372, 0.01
    %v390 = vmax.f32 %v327, %v374
    %v391 = vmax.f32 %v330, %v375
    %v392 = vmax.f32 %v333, %v376
    %v393 = vmax.f32 %v336, %v377
    %v394 = vmax.f32 %v339, %v378
    %v395 = vmax.f32 %v342, %v379
    %v396 = vmax.f32 %v345, %v380
    %v397 = vmax.f32 %v348, %v381
    %v398 = vmax.f32 %v351, %v382
    %v399 = vmax.f32 %v354, %v383
    %v400 = vmax.f32 %v357, %v384
    %v401 = vmax.f32 %v360, %v385
    %v402 = vmax.f32 %v363, %v386
    %v403 = vmax.f32 %v366, %v387
    %v404 = vmax.f32 %v369, %v388
    %v405 = vmax.f32 %v372, %v389
    %v406 = vld [vmem:[#allocation4] sm:$0xff]
    %v407 = vld [vmem:[#allocation4 + $0x8] sm:$0xff]
    %v408 = vld [vmem:[#allocation4 + $0x10] sm:$0xff]
    %v409 = vld [vmem:[#allocation4 + $0x18] sm:$0xff]
    %v410 = vld [vmem:[#allocation4 + $0x20] sm:$0xff]
    %v411 = vld [vmem:[#allocation4 + $0x28] sm:$0xff]
    %v412 = vld [vmem:[#allocation4 + $0x30] sm:$0xff]
    %v413 = vld [vmem:[#allocation4 + $0x38] sm:$0xff]
    %v414 = vld [vmem:[#allocation4 + $0x40] sm:$0xff]
    %v415 = vld [vmem:[#allocation4 + $0x48] sm:$0xff]
    %v416 = vld [vmem:[#allocation4 + $0x50] sm:$0xff]
    %v417 = vld [vmem:[#allocation4 + $0x58] sm:$0xff]
    %v418 = vld [vmem:[#allocation4 + $0x60] sm:$0xff]
    %v419 = vld [vmem:[#allocation4 + $0x68] sm:$0xff]
    %v420 = vld [vmem:[#allocation4 + $0x70] sm:$0xff]
    %v421 = vld [vmem:[#allocation4 + $0x78] sm:$0xff]
    %v422 = vld [vmem:[%s6] sm:$0x1]
    %v424 = vperm.slane %v422, 0
    %426 = vmatpush.msra.mxu0 %v421
    %427 = vmatpush.msra.mxu0 %v420
    %428 = vmatpush.msra.mxu0 %v419
    %429 = vmatpush.msra.mxu0 %v418
    %430 = vmatpush.msra.mxu0 %v417
    %431 = vmatpush.msra.mxu0 %v416
    %432 = vmatpush.msra.mxu0 %v415
    %433 = vmatpush.msra.mxu0 %v414
    %434 = vmatpush.msra.mxu0 %v413
    %435 = vmatpush.msra.mxu0 %v412
    %436 = vmatpush.msra.mxu0 %v411
    %437 = vmatpush.msra.mxu0 %v410
    %438 = vmatpush.msra.mxu0 %v409
    %439 = vmatpush.msra.mxu0 %v408
    %440 = vmatpush.msra.mxu0 %v407
    %441 = vmatpush.msra.mxu0 %v406
    %442 = vmatmul.f32.gmra.mxu0 %v390
    %v443 = vpop.f32.mrf.mxu0
    %v444 = vadd.f32 %v424, %v443
    %445 = vmatmul.f32.gmra.mxu0 %v391
    %v446 = vpop.f32.mrf.mxu0
    %v447 = vadd.f32 %v424, %v446
    %448 = vmatmul.f32.gmra.mxu0 %v392
    %v449 = vpop.f32.mrf.mxu0
    %v450 = vadd.f32 %v424, %v449
    %451 = vmatmul.f32.gmra.mxu0 %v393
    %v452 = vpop.f32.mrf.mxu0
    %v453 = vadd.f32 %v424, %v452
    %454 = vmatmul.f32.gmra.mxu0 %v394
    %v455 = vpop.f32.mrf.mxu0
    %v456 = vadd.f32 %v424, %v455
    %457 = vmatmul.f32.gmra.mxu0 %v395
    %v458 = vpop.f32.mrf.mxu0
    %v459 = vadd.f32 %v424, %v458
    %460 = vmatmul.f32.gmra.mxu0 %v396
    %v461 = vpop.f32.mrf.mxu0
    %v462 = vadd.f32 %v424, %v461
    %463 = vmatmul.f32.gmra.mxu0 %v397
    %v464 = vpop.f32.mrf.mxu0
    %v465 = vadd.f32 %v424, %v464
    %466 = vmatmul.f32.gmra.mxu0 %v398
    %v467 = vpop.f32.mrf.mxu0
    %v468 = vadd.f32 %v424, %v467
    %469 = vmatmul.f32.gmra.mxu0 %v399
    %v470 = vpop.f32.mrf.mxu0
    %v471 = vadd.f32 %v424, %v470
    %472 = vmatmul.f32.gmra.mxu0 %v400
    %v473 = vpop.f32.mrf.mxu0
    %v474 = vadd.f32 %v424, %v473
    %475 = vmatmul.f32.gmra.mxu0 %v401
    %v476 = vpop.f32.mrf.mxu0
    %v477 = vadd.f32 %v424, %v476
    %478 = vmatmul.f32.gmra.mxu0 %v402
    %v479 = vpop.f32.mrf.mxu0
    %v480 = vadd.f32 %v424, %v479
    %481 = vmatmul.f32.gmra.mxu0 %v403
    %v482 = vpop.f32.mrf.mxu0
    %v483 = vadd.f32 %v424, %v482
    %484 = vmatmul.f32.gmra.mxu0 %v404
    %v485 = vpop.f32.mrf.mxu0
    %v486 = vadd.f32 %v424, %v485
    %487 = vmatmul.f32.gmra.mxu0 %v405
    %v488 = vpop.f32.mrf.mxu0
    %v489 = vadd.f32 %v424, %v488
    %490 = vdwg.mxu0
    %491 = vst [vmem:[%s7] sm:$0xff] %v444
    %492 = vst [vmem:[%s7 + $0x8] sm:$0xff] %v447
    %493 = vst [vmem:[%s7 + $0x10] sm:$0xff] %v450
    %494 = vst [vmem:[%s7 + $0x18] sm:$0xff] %v453
    %495 = vst [vmem:[%s7 + $0x20] sm:$0xff] %v456
    %496 = vst [vmem:[%s7 + $0x28] sm:$0xff] %v459
    %497 = vst [vmem:[%s7 + $0x30] sm:$0xff] %v462
    %498 = vst [vmem:[%s7 + $0x38] sm:$0xff] %v465
    %499 = vst [vmem:[%s7 + $0x40] sm:$0xff] %v468
    %500 = vst [vmem:[%s7 + $0x48] sm:$0xff] %v471
    %501 = vst [vmem:[%s7 + $0x50] sm:$0xff] %v474
    %502 = vst [vmem:[%s7 + $0x58] sm:$0xff] %v477
    %503 = vst [vmem:[%s7 + $0x60] sm:$0xff] %v480
    %504 = vst [vmem:[%s7 + $0x68] sm:$0xff] %v483
    %505 = vst [vmem:[%s7 + $0x70] sm:$0xff] %v486
    %506 = vst [vmem:[%s7 + $0x78] sm:$0xff] %v489
    // Predicated region
    $region38: #{dqn_forward.1} parent=1 // pred_check
      _
    $region39: #{dqn_forward.1} parent=1 // pred_check_branch
      %508 = sbr.rel (0) target = $region41
    $region40: #{dqn_forward.1} parent=1 // pred_region
      _
    $region41: #{dqn_forward.1} parent=1 // pred_fallthru
      _
    // Predicated region
    $region42: #{dqn_forward.1} parent=1 // pred_check
      _
    $region43: #{dqn_forward.1} parent=1 // pred_check_branch
      %510 = sbr.rel (0) target = $region45
    $region44: #{dqn_forward.1} parent=1 // pred_region
      _
    $region45: #{dqn_forward.1} parent=1 // pred_fallthru
      _
    %511 = vsyncpa [#allocation3], 1
    %512 = vsyncpa [#allocation5], 1

</llo_original>
